<compile_context>
chip_gen: v7x
topology: tpu7x:2x2x1
jax: 0.10.0
libtpu: 0.0.40
codegen_flags: <defaults>
</compile_context>

<pallas_src>
import jax
import jax.numpy as jnp
from jax import lax
from jax.experimental import pallas as pl
from jax.experimental.pallas import tpu as pltpu


def _round_up(x, m):
    return (x + m - 1) // m * m


def _mm_sum_add_kernel(x1_ref, x2_ref, inp_ref, psum_ref, out_ref):
    k = pl.program_id(2)

    @pl.when(k == 0)
    def _init():
        out_ref[...] = jnp.zeros_like(out_ref)

    # MXU matmul, f32 accumulation directly into the resident output block.
    out_ref[...] += jnp.dot(
        x1_ref[...], x2_ref[...], preferred_element_type=jnp.float32
    )

    @pl.when(k == pl.num_programs(2) - 1)
    def _finalize():
        v1 = out_ref[...]
        # Partial sum of the pure matmul tile (before the bias add) -> SMEM.
        # Exact because padded rows/cols of x1/x2 are zero.
        psum_ref[0, 0] = jnp.sum(v1)
        # v3 tile = v1 + inp (inp broadcast along rows), lane-dense f32 store.
        out_ref[...] = v1 + inp_ref[...]


def mm_sum_add(x1, x2, inp, *, tm=512, tn=512, tk=1024):
    """Returns (v2, v3) matching the PyTorch module's forward.

    v2 = sum(x1 @ x2)            (scalar, f32)
    v3 = (x1 @ x2) + inp         (shape (M, N), f32)
    """
    M, K = x1.shape
    K2, N = x2.shape
    assert K == K2
    assert inp.shape == (N,)

    x1 = x1.astype(jnp.float32)
    x2 = x2.astype(jnp.float32)
    inp = inp.astype(jnp.float32)

    # Shrink tiles for small problems while keeping (8, 128) alignment.
    tm = min(tm, _round_up(M, 8))
    tn = min(tn, _round_up(N, 128))
    tk = min(tk, _round_up(K, 128))

    Mp, Kp, Np = _round_up(M, tm), _round_up(K, tk), _round_up(N, tn)

    # Megacore heuristic (v7x has 2 TensorCores): ensure >= 2 independent
    # (i, j) tiles when possible so both cores get work.
    if (Mp // tm) * (Np // tn) < 2 and tn > 128:
        tn = max(128, _round_up(tn // 2, 128))
        Np = _round_up(N, tn)

    gm, gn, gk = Mp // tm, Np // tn, Kp // tk

    # Zero-pad inputs only when ragged; aligned shapes incur no extra copy.
    # Padded rows/cols contribute nothing to the matmul, so the in-kernel
    # full-tile sum stays exact.
    if (M, K) == (Mp, Kp):
        x1p = x1
    else:
        x1p = jnp.zeros((Mp, Kp), jnp.float32).at[:M, :K].set(x1)
    if (K, N) == (Kp, Np):
        x2p = x2
    else:
        x2p = jnp.zeros((Kp, Np), jnp.float32).at[:K, :N].set(x2)
    if N == Np:
        inp2 = inp.reshape(1, N)
    else:
        inp2 = jnp.zeros((1, Np), jnp.float32).at[0, :N].set(inp)

    psum, v3 = pl.pallas_call(
        _mm_sum_add_kernel,
        out_shape=(
            jax.ShapeDtypeStruct((gm, gn), jnp.float32),   # per-tile partial sums
            jax.ShapeDtypeStruct((M, N), jnp.float32),     # v3 (true shape; edge writes clipped)
        ),
        grid_spec=pltpu.PrefetchScalarGridSpec(
            num_scalar_prefetch=0,
            grid=(gm, gn, gk),
            in_specs=[
                pl.BlockSpec((tm, tk), lambda i, j, k: (i, k)),
                pl.BlockSpec((tk, tn), lambda i, j, k: (k, j)),
                pl.BlockSpec((1, tn), lambda i, j, k: (0, j)),
            ],
            out_specs=(
                pl.BlockSpec((1, 1), lambda i, j, k: (i, j),
                             memory_space=pltpu.MemorySpace.SMEM),
                pl.BlockSpec((tm, tn), lambda i, j, k: (i, j)),
            ),
        ),
        compiler_params=pltpu.CompilerParams(
            dimension_semantics=("parallel", "parallel", "arbitrary"),
            vmem_limit_bytes=32 * 1024 * 1024,
        ),
        cost_estimate=pl.CostEstimate(
            flops=2 * M * N * K,
            transcendentals=0,
            bytes_accessed=4 * (M * K + K * N + M * N + N),
        ),
    )(x1p, x2p, inp2)

    v2 = jnp.sum(psum)          # tiny (gm, gn) reduce, fused by XLA
    return v2, v3


if __name__ == "__main__":
    key = jax.random.PRNGKey(0)
    k1, k2, k3, k4, k5, k6 = jax.random.split(key, 6)

    # Case 1: shapes implied by the original module (x1:(3,4), x2:(4,6), inp len N).
    # Case 2: multi-tile grid (gm=1, gn=2, gk=2), fully aligned -> no pad copies.
    cases = [
        (3, 4, 6, (k1, k2, k3)),
        (384, 2048, 512, (k4, k5, k6)),
    ]

    run = jax.jit(mm_sum_add)

    for (M, K, N, (ka, kb, kc)) in cases:
        x1 = jax.random.normal(ka, (M, K), dtype=jnp.float32)
        x2 = jax.random.normal(kb, (K, N), dtype=jnp.float32)
        inp = jax.random.normal(kc, (N,), dtype=jnp.float32)

        v2, v3 = run(x1, x2, inp)
        jax.block_until_ready((v2, v3))

        # Reference in plain JAX (highest precision to avoid bf16 fast path).
        v1_ref = jnp.dot(x1, x2, precision=lax.Precision.HIGHEST)
        v2_ref = jnp.sum(v1_ref)
        v3_ref = v1_ref + inp

        sum_abs = jnp.sum(jnp.abs(v1_ref))
        assert jnp.abs(v2 - v2_ref) <= 1e-5 * sum_abs + 1e-3, (M, K, N)
        assert jnp.allclose(v3, v3_ref, rtol=2e-4, atol=2e-2), (M, K, N)

    print("KERNEL_OK")
</pallas_src>

<mosaic_0001>
module attributes {stable_mosaic.version = 11 : i64} {
  func.func @_mm_sum_add_kernel(%arg0: i32, %arg1: i32, %arg2: i32, %arg3: memref<8x128xf32, #tpu.memory_space<vmem>>, %arg4: memref<128x128xf32, #tpu.memory_space<vmem>>, %arg5: memref<1x128xf32, #tpu.memory_space<vmem>>, %arg6: memref<1x1xf32, #tpu.memory_space<smem>>, %arg7: memref<8x128xf32, #tpu.memory_space<vmem>>) attributes {dimension_semantics = [#tpu.dimension_semantics<parallel>, #tpu.dimension_semantics<parallel>, #tpu.dimension_semantics<arbitrary>], iteration_bounds = array<i64: 1, 1, 1>, scalar_prefetch = 0 : i64, scratch_operands = 0 : i64, tpu.core_type = #tpu.core_type<tc>, window_params = [{transform_indices = @transform_0, window_bounds = array<i64: 8, 128>}, {transform_indices = @transform_1, window_bounds = array<i64: 128, 128>}, {transform_indices = @transform_2, window_bounds = array<i64: 1, 128>}, {transform_indices = @transform_3, window_bounds = array<i64: 1, 1>}, {transform_indices = @transform_4, window_bounds = array<i64: 8, 128>}]} {
    %c0_i32 = arith.constant 0 : i32
    %0 = arith.cmpi eq, %arg2, %c0_i32 : i32
    %1 = arith.extui %0 : i1 to i32
    %c0_i32_0 = arith.constant 0 : i32
    %2 = arith.cmpi ne, %1, %c0_i32_0 : i32
    scf.if %2 {
      %cst_10 = arith.constant 0.000000e+00 : f32
      %12 = vector.broadcast %cst_10 : f32 to vector<8x128xf32>
      %c0_11 = arith.constant 0 : index
      %c0_12 = arith.constant 0 : index
      %13 = vector.load %arg7[%c0_11, %c0_12] : memref<8x128xf32, #tpu.memory_space<vmem>>, vector<8x128xf32>
      tpu.vector_store %arg7[%c0_11, %c0_12], %12 {strides = array<i32>} : memref<8x128xf32, #tpu.memory_space<vmem>>, vector<8x128xf32>,
    } else {
    }
    %c0 = arith.constant 0 : index
    %c0_1 = arith.constant 0 : index
    %3 = vector.load %arg7[%c0, %c0_1] : memref<8x128xf32, #tpu.memory_space<vmem>>, vector<8x128xf32>
    %c0_2 = arith.constant 0 : index
    %c0_3 = arith.constant 0 : index
    %4 = vector.load %arg3[%c0_2, %c0_3] : memref<8x128xf32, #tpu.memory_space<vmem>>, vector<8x128xf32>
    %c0_4 = arith.constant 0 : index
    %c0_5 = arith.constant 0 : index
    %5 = vector.load %arg4[%c0_4, %c0_5] : memref<128x128xf32, #tpu.memory_space<vmem>>, vector<128x128xf32>
    %cst = arith.constant dense<0.000000e+00> : vector<8x128xf32>
    %6 = tpu.matmul %4, %5, %cst {dimension_numbers = #tpu.dot_dimension_numbers<[1], [0], [0], [1], [0, 0, 1, 1], [], []>} : vector<8x128xf32>, vector<128x128xf32>, vector<8x128xf32> -> vector<8x128xf32>
    %7 = arith.addf %3, %6 : vector<8x128xf32>
    %c0_6 = arith.constant 0 : index
    %c0_7 = arith.constant 0 : index
    %8 = vector.load %arg7[%c0_6, %c0_7] : memref<8x128xf32, #tpu.memory_space<vmem>>, vector<8x128xf32>
    tpu.vector_store %arg7[%c0_6, %c0_7], %7 {strides = array<i32>} : memref<8x128xf32, #tpu.memory_space<vmem>>, vector<8x128xf32>,
    %c0_i32_8 = arith.constant 0 : i32
    %9 = arith.cmpi eq, %arg2, %c0_i32_8 : i32
    %10 = arith.extui %9 : i1 to i32
    %c0_i32_9 = arith.constant 0 : i32
    %11 = arith.cmpi ne, %10, %c0_i32_9 : i32
    scf.if %11 {
      %c0_10 = arith.constant 0 : index
      %c0_11 = arith.constant 0 : index
      %12 = vector.load %arg7[%c0_10, %c0_11] : memref<8x128xf32, #tpu.memory_space<vmem>>, vector<8x128xf32>
      %13 = vector.shape_cast %12 : vector<8x128xf32> to vector<1x8x128xf32>
      %cst_12 = arith.constant dense<0.000000e+00> : vector<1xf32>
      %14 = vector.multi_reduction <add>, %13, %cst_12 [1, 2] : vector<1x8x128xf32> to vector<1xf32>
      %15 = vector.shape_cast %14 : vector<1xf32> to vector<1x1x1xf32>
      %16 = vector.extract %15[0, 0, 0] : f32 from vector<1x1x1xf32>
      %c0_13 = arith.constant 0 : index
      %c0_14 = arith.constant 0 : index
      %17 = memref.load %arg6[%c0_13, %c0_14] : memref<1x1xf32, #tpu.memory_space<smem>>
      memref.store %16, %arg6[%c0_13, %c0_14] : memref<1x1xf32, #tpu.memory_space<smem>>
      %c0_15 = arith.constant 0 : index
      %c0_16 = arith.constant 0 : index
      %18 = vector.load %arg5[%c0_15, %c0_16] : memref<1x128xf32, #tpu.memory_space<vmem>>, vector<1x128xf32>
      %19 = vector.broadcast %18 : vector<1x128xf32> to vector<8x128xf32>
      %20 = arith.addf %12, %19 : vector<8x128xf32>
      %c0_17 = arith.constant 0 : index
      %c0_18 = arith.constant 0 : index
      %21 = vector.load %arg7[%c0_17, %c0_18] : memref<8x128xf32, #tpu.memory_space<vmem>>, vector<8x128xf32>
      tpu.vector_store %arg7[%c0_17, %c0_18], %20 {strides = array<i32>} : memref<8x128xf32, #tpu.memory_space<vmem>>, vector<8x128xf32>,
    } else {
    }
    return
  }
  func.func @transform_0(%arg0: i32, %arg1: i32, %arg2: i32) -> (i32, i32) {
    %c0_i32 = arith.constant 0 : i32
    return %arg0, %arg2 : i32, i32
  }
  func.func @transform_1(%arg0: i32, %arg1: i32, %arg2: i32) -> (i32, i32) {
    %c0_i32 = arith.constant 0 : i32
    return %arg2, %arg1 : i32, i32
  }
  func.func @transform_2(%arg0: i32, %arg1: i32, %arg2: i32) -> (i32, i32) {
    %c0_i32 = arith.constant 0 : i32
    %c0_i32_0 = arith.constant 0 : i32
    return %c0_i32, %arg1 : i32, i32
  }
  func.func @transform_3(%arg0: i32, %arg1: i32, %arg2: i32) -> (i32, i32) {
    %c0_i32 = arith.constant 0 : i32
    return %arg0, %arg1 : i32, i32
  }
  func.func @transform_4(%arg0: i32, %arg1: i32, %arg2: i32) -> (i32, i32) {
    %c0_i32 = arith.constant 0 : i32
    return %arg0, %arg1 : i32, i32
  }
}

</mosaic_0001>

<llo_original>
// kernel: mm_sum_add.1
$region0: #{mm_sum_add.1}
  #allocation0 [shape = 'u32[]', space=smem, size = 0x4, offset = 0x4, fixed_abs, tag = 'smem constant byte address 0x4 - core index']
  #allocation1 [shape = 'u32[144,128]{1,0:T(1,128)}', space=vmem, size = 0x12000, scoped, tag = 'internal scratch']
  %s0 = inlined_call_operand.vmem [shape: f32[8,128], index: 0, kind: input, shape index: {}]
  %s1 = inlined_call_operand.vmem [shape: f32[128,128], index: 1, kind: input, shape index: {}]
  %s2 = inlined_call_operand.vmem [shape: f32[1,128], index: 2, kind: input, shape index: {}]
  %s3 = inlined_call_operand.hbm [shape: f32[1,1], index: 3, kind: output, shape index: {0}]
  %s4 = inlined_call_operand.hbm [shape: f32[3,6], index: 4, kind: output, shape index: {1}]
  %5 = xla_tuple %s3, %s4
  %s6 = sld [smem:[#allocation0]]
  $region38: #{mm_sum_add.1} parent=0
    _
  %s8 = ssub.s32 1, %s6
  %s9 = scalar_select 0, %s8, %s6
  $region1: #{mm_sum_add.1} parent=0
    #allocation2 [shape = 'u8[512]{0}', space=smem, size = 0x200, scoped, tag = 'output window, operand 0, single buffered']
    #allocation3 [shape = 's32[1]{0}', space=sflag, size = 0x4, scoped, tag = 'scoped memory for mm_sum_add.1']
    #allocation4 [shape = 's32[1]{0}', space=sflag, size = 0x4, scoped, tag = 'scoped memory for mm_sum_add.1']
    #allocation5 [shape = 'u8[4096]{0}', space=vmem, size = 0x1000, scoped, tag = 'output window, operand 1, single buffered']
    %10 = vsyncpa [#allocation4], 0
    %11 = vsyncpa [#allocation3], 0
    // Predicated region
    $region2: #{mm_sum_add.1} parent=1 // pred_check
      _
    $region3: #{mm_sum_add.1} parent=1 // pred_check_branch
      %13 = sbr.rel (0) target = $region5
    $region4: #{mm_sum_add.1} parent=1 // pred_region
      _
    $region5: #{mm_sum_add.1} parent=1 // pred_fallthru
      _
    // Predicated region
    $region6: #{mm_sum_add.1} parent=1 // pred_check
      _
    $region7: #{mm_sum_add.1} parent=1 // pred_check_branch
      %15 = sbr.rel (0) target = $region9
    $region8: #{mm_sum_add.1} parent=1 // pred_region
      _
    $region9: #{mm_sum_add.1} parent=1 // pred_fallthru
      _
    // Predicated region
    $region10: #{mm_sum_add.1} parent=1 // pred_check
      _
    $region11: #{mm_sum_add.1} parent=1 // pred_check_branch
      %17 = sbr.rel (0) target = $region13
    $region12: #{mm_sum_add.1} parent=1 // pred_region
      _
    $region13: #{mm_sum_add.1} parent=1 // pred_fallthru
      _
    %p18 = scmp.eq.s32.totalorder 0, 0
    // Predicated region
    $region14: #{mm_sum_add.1} parent=1 // pred_check
      %p19 = pneg %p18
    $region15: #{mm_sum_add.1} parent=1 // pred_check_branch
      %21 = sbr.rel (%p19) target = $region17
    $region16: #{mm_sum_add.1} parent=1 // pred_region
      %22 = vst [vmem:[#allocation5] sm:$0xff] 0.0
    $region17: #{mm_sum_add.1} parent=1 // pred_fallthru
      _
    %v23 = vld [vmem:[#allocation5] sm:$0xff]
    %v24 = vld [vmem:[%s0] sm:$0xff]
    %v25 = vld [vmem:[%s1] sm:$0xff]
    %v26 = vld [vmem:[%s1 + $0x8] sm:$0xff]
    %v27 = vld [vmem:[%s1 + $0x10] sm:$0xff]
    %v28 = vld [vmem:[%s1 + $0x18] sm:$0xff]
    %v29 = vld [vmem:[%s1 + $0x20] sm:$0xff]
    %v30 = vld [vmem:[%s1 + $0x28] sm:$0xff]
    %v31 = vld [vmem:[%s1 + $0x30] sm:$0xff]
    %v32 = vld [vmem:[%s1 + $0x38] sm:$0xff]
    %v33 = vld [vmem:[%s1 + $0x40] sm:$0xff]
    %v34 = vld [vmem:[%s1 + $0x48] sm:$0xff]
    %v35 = vld [vmem:[%s1 + $0x50] sm:$0xff]
    %v36 = vld [vmem:[%s1 + $0x58] sm:$0xff]
    %v37 = vld [vmem:[%s1 + $0x60] sm:$0xff]
    %v38 = vld [vmem:[%s1 + $0x68] sm:$0xff]
    %v39 = vld [vmem:[%s1 + $0x70] sm:$0xff]
    %v40 = vld [vmem:[%s1 + $0x78] sm:$0xff]
    %41 = vmatprep.subr.mxu0 0.0
    %42 = vmatpush1.msra.mxu0 %v25
    %43 = vmatprep.subr.mxu0 0.0
    %44 = vmatpush1.msra.mxu0 %v26
    %45 = vmatprep.subr.mxu0 0.0
    %46 = vmatpush1.msra.mxu0 %v27
    %47 = vmatprep.subr.mxu0 0.0
    %48 = vmatpush1.msra.mxu0 %v28
    %49 = vmatprep.subr.mxu0 0.0
    %50 = vmatpush1.msra.mxu0 %v29
    %51 = vmatprep.subr.mxu0 0.0
    %52 = vmatpush1.msra.mxu0 %v30
    %53 = vmatprep.subr.mxu0 0.0
    %54 = vmatpush1.msra.mxu0 %v31
    %55 = vmatprep.subr.mxu0 0.0
    %56 = vmatpush1.msra.mxu0 %v32
    %57 = vmatprep.subr.mxu0 0.0
    %58 = vmatpush1.msra.mxu0 %v33
    %59 = vmatprep.subr.mxu0 0.0
    %60 = vmatpush1.msra.mxu0 %v34
    %61 = vmatprep.subr.mxu0 0.0
    %62 = vmatpush1.msra.mxu0 %v35
    %63 = vmatprep.subr.mxu0 0.0
    %64 = vmatpush1.msra.mxu0 %v36
    %65 = vmatprep.subr.mxu0 0.0
    %66 = vmatpush1.msra.mxu0 %v37
    %67 = vmatprep.subr.mxu0 0.0
    %68 = vmatpush1.msra.mxu0 %v38
    %69 = vmatprep.subr.mxu0 0.0
    %70 = vmatpush1.msra.mxu0 %v39
    %71 = vmatprep.subr.mxu0 0.0
    %72 = vmatpush1.msra.mxu0 %v40
    %73 = vmatprep.subr.mxu0 0.0
    %74 = vmatpush1.msra.mxu0 0.0
    %75 = vmatprep.subr.mxu0 0.0
    %76 = vmatpush1.msra.mxu0 0.0
    %77 = vmatprep.subr.mxu0 0.0
    %78 = vmatpush1.msra.mxu0 0.0
    %79 = vmatprep.subr.mxu0 0.0
    %80 = vmatpush1.msra.mxu0 0.0
    %81 = vmatprep.subr.mxu0 0.0
    %82 = vmatpush1.msra.mxu0 0.0
    %83 = vmatprep.subr.mxu0 0.0
    %84 = vmatpush1.msra.mxu0 0.0
    %85 = vmatprep.subr.mxu0 0.0
    %86 = vmatpush1.msra.mxu0 0.0
    %87 = vmatprep.subr.mxu0 0.0
    %88 = vmatpush1.msra.mxu0 0.0
    %89 = vmatprep.subr.mxu0 0.0
    %90 = vmatpush1.msra.mxu0 0.0
    %91 = vmatprep.subr.mxu0 0.0
    %92 = vmatpush1.msra.mxu0 0.0
    %93 = vmatprep.subr.mxu0 0.0
    %94 = vmatpush1.msra.mxu0 0.0
    %95 = vmatprep.subr.mxu0 0.0
    %96 = vmatpush1.msra.mxu0 0.0
    %97 = vmatprep.subr.mxu0 0.0
    %98 = vmatpush1.msra.mxu0 0.0
    %99 = vmatprep.subr.mxu0 0.0
    %100 = vmatpush1.msra.mxu0 0.0
    %101 = vmatprep.subr.mxu0 0.0
    %102 = vmatpush1.msra.mxu0 0.0
    %103 = vmatprep.subr.mxu0 0.0
    %104 = vmatpush1.msra.mxu0 0.0
    %105 = vmatprep.mubr.f32.mxu0 0.0
    %106 = vmatmul.mubr.f32.gmra.mrb[0].mxu0 %v24
    %v107 = vpop.f32.mrb[0].mxu0
    %v108 = vadd.f32 0.0, %v107
    %v109 = vpop.f32.mrb[0].mxu0
    %110 = vdwg.mxu0
    %v111 = vadd.f32 %v23, %v108
    %112 = vst [vmem:[#allocation5] sm:$0xff] %v111
    // Predicated region
    $region18: #{mm_sum_add.1} parent=1 // pred_check
      %p113 = pneg %p18
    $region19: #{mm_sum_add.1} parent=1 // pred_check_branch
      %115 = sbr.rel (%p113) target = $region21
    $region20: #{mm_sum_add.1} parent=1 // pred_region
      %v116 = vld [vmem:[#allocation5] sm:$0xff]
      %117 = vadd.xlane.f32.xlu0 %v116
      %v118 = vpop.xlane.xlu0 %117
      %v119 = vrot.slane %v118, 4
      %v120 = vadd.f32 %v118, %v119
      %v121 = vrot.slane %v120, 2
      %v122 = vadd.f32 %v120, %v121
      %v123 = vrot.slane %v122, 1
      %v124 = vadd.f32 %v122, %v123
      %s125 = vtos %v124
      %s126 = scalar_lea.smem [#allocation2], 0
      %127 = sst [smem:[%s126]] %s125
      %v128 = vld [vmem:[%s2] sm:$0x1]
      %v130 = vlaneseq
      %v131 = vshrl.u32 %v130, 7
      %v132 = vsub.s32 0, %v131
      %v133 = vrot.slane %v128, %v132
      %v135 = vadd.f32 %v116, %v133
      %136 = vst [vmem:[#allocation5] sm:$0xff] %v135
    $region21: #{mm_sum_add.1} parent=1 // pred_fallthru
      _
    // Predicated region
    $region22: #{mm_sum_add.1} parent=1 // pred_check
      _
    $region23: #{mm_sum_add.1} parent=1 // pred_check_branch
      %138 = sbr.rel (0) target = $region25
    $region24: #{mm_sum_add.1} parent=1 // pred_region
      %s140 = ssub.s32 16, 16
      %141 = vsyncadd [#allocation4], %s140
      %144 = dma.smem_to_hbm [#allocation2], 16, %s3, [#allocation4]
    $region25: #{mm_sum_add.1} parent=1 // pred_fallthru
      _
    // Predicated region
    $region26: #{mm_sum_add.1} parent=1 // pred_check
      _
    $region27: #{mm_sum_add.1} parent=1 // pred_check_branch
      %146 = sbr.rel (0) target = $region29
    $region28: #{mm_sum_add.1} parent=1 // pred_region
      %s148 = ssub.s32 128, 64
      %149 = vsyncadd [#allocation3], %s148
      %s150 = sshll.u32 [#allocation5], 4
      %s151 = int_to_ptr.vmem [resolvable:$true] %s150
      %156 = dma.vmem_to_hbm [thread:$0]  %s151, 64, %s4, [#allocation3], 64, 64, 4
    $region29: #{mm_sum_add.1} parent=1 // pred_fallthru
      _
    // Predicated region
    $region30: #{mm_sum_add.1} parent=1 // pred_check
      _
    $region31: #{mm_sum_add.1} parent=1 // pred_check_branch
      %158 = sbr.rel (0) target = $region33
    $region32: #{mm_sum_add.1} parent=1 // pred_region
      %159 = dma.done [#allocation4], 16
    $region33: #{mm_sum_add.1} parent=1 // pred_fallthru
      _
    // Predicated region
    $region34: #{mm_sum_add.1} parent=1 // pred_check
      _
    $region35: #{mm_sum_add.1} parent=1 // pred_check_branch
      %161 = sbr.rel (0) target = $region37
    $region36: #{mm_sum_add.1} parent=1 // pred_region
      %162 = dma.done [#allocation3], 128
    $region37: #{mm_sum_add.1} parent=1 // pred_fallthru
      _
    %163 = sfence
    %164 = vsyncpa [#allocation3], 1
    %165 = vsyncpa [#allocation4], 1

</llo_original>
